<compile_context>
chip_gen: v5e
topology: v5e:2x2
jax: 0.10.0
libtpu: 0.0.40
codegen_flags: <defaults>
</compile_context>

<pallas_src>
import functools
import math

import jax
import jax.numpy as jnp
from jax.experimental import pallas as pl
from jax.experimental.pallas import tpu as pltpu


def _make_pe_table(d_model: int, max_len: int = 1000) -> jnp.ndarray:
    """Deterministic sin/cos positional-encoding buffer, matching torch init."""
    position = jnp.arange(0, max_len, dtype=jnp.float32)[:, None]          # [L, 1]
    div_term = jnp.exp(
        jnp.arange(0, d_model, 2, dtype=jnp.float32) * (-math.log(10000.0) / d_model)
    )                                                                       # [ceil(D/2)]
    angles = position * div_term                                            # [L, ceil(D/2)]
    pe = jnp.zeros((max_len, d_model), dtype=jnp.float32)
    pe = pe.at[:, 0::2].set(jnp.sin(angles))
    if d_model % 2:
        pe = pe.at[:, 1::2].set(jnp.cos(angles)[:, :-1])
    else:
        pe = pe.at[:, 1::2].set(jnp.cos(angles))
    # unsqueeze(0).transpose(0, 1) -> [max_len, 1, d_model]
    return pe[:, None, :]


def _round_up(v: int, m: int) -> int:
    return -(-v // m) * m


def _default_vmem_limit_bytes() -> int:
    """Per-generation scoped-VMEM budget (~5/8 of physical capacity).

    ~40 MiB on v7x (64 MiB / TC), ~80 MiB on v5e/v6e (128 MiB). Falls back to a
    value that is safe on every generation if the hardware query is unavailable.
    """
    try:
        cap = int(pltpu.get_tpu_info().vmem_capacity_bytes)
        return min(cap * 5 // 8, 96 * 1024 * 1024)
    except Exception:
        return 40 * 1024 * 1024


def _pe_cat_kernel(x_ref, pe_ref, o_ref, *, batch: int, feat: int, d_model: int,
                   aligned: bool):
    # x_ref : [TS, batch*feat]            (lane-dense row-major view of [TS,B,F])
    # pe_ref: [TS, d_model]
    # o_ref : [TS, batch*(feat+d_model)]  (lane-dense row-major view of [TS,B,F+D])
    pe = pe_ref[...]                       # load PE tile once, reuse for every b
    stride = feat + d_model
    if aligned:
        # feat and feat+d_model are multiples of 128 -> every column start is
        # lane-aligned, so these lower to full unmasked vst (no lane rotates).
        for b in range(batch):             # small static unrolled loop over batch
            o_ref[:, b * stride: b * stride + feat] = x_ref[:, b * feat: (b + 1) * feat]
            o_ref[:, b * stride + feat: (b + 1) * stride] = pe
    else:
        # Misaligned column starts would cost 2*B masked vst.msk + lane rotates
        # (binding on v5e's single vector-store slot). Assemble the whole tile
        # in registers instead and issue one full-width unmasked store.
        # TODO(synk): for very large B, move batch into the grid (squeezed dim)
        # so the output-BlockSpec DMA does the interleave (needs (F+D)%128==0).
        x = x_ref[...]
        pieces = []
        for b in range(batch):
            pieces.append(x[:, b * feat: (b + 1) * feat])
            pieces.append(pe)
        o_ref[...] = jnp.concatenate(pieces, axis=-1)


def positional_encoding_cat(
    x: jnp.ndarray,
    pe: jnp.ndarray,
    *,
    block_s: int | None = None,
    vmem_limit_bytes: int | None = None,
    min_pallas_out_bytes: int = 1 << 20,
    force_pallas: bool = False,
) -> jnp.ndarray:
    """x: [S, B, F], pe: [max_len, 1, D] (or [max_len, D]) -> [S, B, F + D]."""
    S, B, F = x.shape
    max_len = pe.shape[0]
    D = pe.shape[-1]
    if S > max_len:
        raise ValueError(
            f"sequence length {S} exceeds positional-encoding max_len {max_len}"
        )

    dtype = x.dtype
    itemsize = dtype.itemsize
    pe2d = pe.reshape(max_len, D)                      # free row-major view
    if pe2d.dtype != dtype:                            # cast only when needed
        pe2d = pe2d.astype(dtype)

    out_bytes = S * B * (F + D) * itemsize
    if not force_pallas and out_bytes < min_pallas_out_bytes:
        # pallas_call launch / grid bookkeeping exceeds the copy time here.
        return jnp.concatenate(
            [x, jnp.broadcast_to(pe2d[:S, None, :], (S, B, D))], axis=-1
        )

    x2d = x.reshape(S, B * F)                          # lane-dense [S, B*F]

    if vmem_limit_bytes is None:
        vmem_limit_bytes = _default_vmem_limit_bytes()

    # --- Sequence-tile selection -------------------------------------------
    sublane = max(8, 32 // itemsize)                   # 8 f32, 16 bf16, 32 int8
    out_row_bytes = B * (F + D) * itemsize
    row_bytes = (B * F + D + B * (F + D)) * itemsize   # x + pe + out per row
    if block_s is None:
        # (1) VMEM ceiling: 2 pipeline buffers per operand, ~80% of the limit.
        ts_vmem = max(
            sublane,
            (int(0.8 * vmem_limit_bytes) // (2 * row_bytes)) // sublane * sublane,
        )
        # (2) payload floor: >= ~1 MiB of output per grid step (per-step
        #     overhead ~0.35 us; tiny tiles sit far below the HBM roofline).
        ts_payload = _round_up(max(1, min_pallas_out_bytes // out_row_bytes), sublane)
        # (3) pipeline target: >= 4 grid steps -> prefetch/writeback overlap and
        #     even sharding of S-tiles across v7x's 2 TensorCores.
        ts_pipeline = _round_up(pl.cdiv(S, 4), sublane)
        block_s = min(ts_vmem, max(ts_payload, ts_pipeline))
    elif block_s < S and block_s % sublane:
        block_s = max(sublane, block_s - block_s % sublane)

    if block_s >= S:
        block_s = S                                    # single full-extent tile
    grid_s = pl.cdiv(S, block_s)

    # pe is passed as the full [max_len, D] table, row-blocked by the same grid
    # index as x. That needs block_s % 8 == 0; otherwise (tiny single-tile case)
    # slice to [:S] so the pe block equals the full array extent.
    pe_in = pe2d if block_s % 8 == 0 else pe2d[:S]

    aligned = (F % 128 == 0) and (D % 128 == 0)

    # Ragged last tile (S % block_s != 0): Pallas pads the trailing rows of
    # x_ref/pe_ref with undefined data, but the matching output rows are
    # clipped on writeback, so the result stays correct.
    out_flat = pl.pallas_call(
        functools.partial(_pe_cat_kernel, batch=B, feat=F, d_model=D, aligned=aligned),
        out_shape=jax.ShapeDtypeStruct((S, B * (F + D)), dtype),
        grid=(grid_s,),
        in_specs=[
            pl.BlockSpec((block_s, B * F), lambda i: (i, 0)),
            pl.BlockSpec((block_s, D), lambda i: (i, 0)),
        ],
        out_specs=pl.BlockSpec((block_s, B * (F + D)), lambda i: (i, 0)),
        compiler_params=pltpu.CompilerParams(
            dimension_semantics=("parallel",),          # shard S-tiles across TCs (v7x)
            vmem_limit_bytes=vmem_limit_bytes,
        ),
    )(x2d, pe_in)

    return out_flat.reshape(S, B, F + D)


def _reference(x: jnp.ndarray, pe: jnp.ndarray) -> jnp.ndarray:
    S, B, _ = x.shape
    D = pe.shape[-1]
    return jnp.concatenate(
        [x, jnp.broadcast_to(pe[:S].astype(x.dtype), (S, B, D))], axis=-1
    )


if __name__ == "__main__":
    key = jax.random.PRNGKey(0)
    k1, k2 = jax.random.split(key)

    # --- Small shapes consistent with the module: seq=8, batch=2, d_model=32.
    #     Exercises the register-assembled (misaligned-column) store path.
    S, B, D_MODEL = 8, 2, 32
    x = jax.random.normal(k1, (S, B, D_MODEL), dtype=jnp.float32)
    pe = _make_pe_table(D_MODEL, max_len=1000)                     # [1000, 1, 32]

    y = jax.block_until_ready(positional_encoding_cat(x, pe, force_pallas=True))
    ref = _reference(x, pe)
    assert y.shape == (S, B, 2 * D_MODEL), y.shape
    assert jnp.array_equal(y, ref), "mismatch vs reference (small case, Pallas)"

    # Auto-dispatch fast path (tiny output -> plain XLA concat) must agree.
    y_fast = jax.block_until_ready(positional_encoding_cat(x, pe))
    assert jnp.array_equal(y_fast, ref), "mismatch vs reference (small case, fast path)"

    # --- Larger case: multiple grid steps (>= 4), aligned-store path
    #     (F, D multiples of 128), ragged last tile, full-length PE table.
    S2, B2, F2 = 1000, 4, 128
    x2 = jax.random.normal(k2, (S2, B2, F2), dtype=jnp.float32)
    pe2 = _make_pe_table(F2, max_len=1000)                         # [1000, 1, 128]
    y2 = jax.block_until_ready(positional_encoding_cat(x2, pe2))
    ref2 = _reference(x2, pe2)
    assert y2.shape == (S2, B2, 2 * F2), y2.shape
    assert jnp.array_equal(y2, ref2), "mismatch vs reference (tiled case)"

    print("KERNEL_OK")
</pallas_src>

<mosaic_0001>
module attributes {stable_mosaic.version = 11 : i64} {
  func.func @_pe_cat_kernel(%arg0: i32, %arg1: memref<8x64xf32, #tpu.memory_space<vmem>>, %arg2: memref<8x32xf32, #tpu.memory_space<vmem>>, %arg3: memref<8x128xf32, #tpu.memory_space<vmem>>) attributes {dimension_semantics = [#tpu.dimension_semantics<parallel>], iteration_bounds = array<i64: 1>, scalar_prefetch = 0 : i64, scratch_operands = 0 : i64, tpu.core_type = #tpu.core_type<tc>, window_params = [{transform_indices = @transform_0, window_bounds = array<i64: 8, 64>}, {transform_indices = @transform_1, window_bounds = array<i64: 8, 32>}, {transform_indices = @transform_2, window_bounds = array<i64: 8, 128>}]} {
    %c0 = arith.constant 0 : index
    %c0_0 = arith.constant 0 : index
    %0 = vector.load %arg2[%c0, %c0_0] : memref<8x32xf32, #tpu.memory_space<vmem>>, vector<8x32xf32>
    %c0_1 = arith.constant 0 : index
    %c0_2 = arith.constant 0 : index
    %1 = vector.load %arg1[%c0_1, %c0_2] : memref<8x64xf32, #tpu.memory_space<vmem>>, vector<8x64xf32>
    %2 = vector.extract_strided_slice %1 {offsets = [0, 0], sizes = [8, 32], strides = [1, 1]} : vector<8x64xf32> to vector<8x32xf32>
    %3 = vector.extract_strided_slice %1 {offsets = [0, 32], sizes = [8, 32], strides = [1, 1]} : vector<8x64xf32> to vector<8x32xf32>
    %4 = tpu.concatenate %2, %0, %3, %0 in 1 : vector<8x32xf32>, vector<8x32xf32>, vector<8x32xf32>, vector<8x32xf32> -> vector<8x128xf32>
    %c0_3 = arith.constant 0 : index
    %c0_4 = arith.constant 0 : index
    %5 = vector.load %arg3[%c0_3, %c0_4] : memref<8x128xf32, #tpu.memory_space<vmem>>, vector<8x128xf32>
    tpu.vector_store %arg3[%c0_3, %c0_4], %4 {strides = array<i32>} : memref<8x128xf32, #tpu.memory_space<vmem>>, vector<8x128xf32>,
    return
  }
  func.func @transform_0(%arg0: i32) -> (i32, i32) {
    %c0_i32 = arith.constant 0 : i32
    %c0_i32_0 = arith.constant 0 : i32
    return %arg0, %c0_i32 : i32, i32
  }
  func.func @transform_1(%arg0: i32) -> (i32, i32) {
    %c0_i32 = arith.constant 0 : i32
    %c0_i32_0 = arith.constant 0 : i32
    return %arg0, %c0_i32 : i32, i32
  }
  func.func @transform_2(%arg0: i32) -> (i32, i32) {
    %c0_i32 = arith.constant 0 : i32
    %c0_i32_0 = arith.constant 0 : i32
    return %arg0, %c0_i32 : i32, i32
  }
}

</mosaic_0001>

<llo_original>
// kernel: tpu_custom_call.1
$region0: #{tpu_custom_call.1}
  #allocation0 [shape = 'u32[]', space=smem, size = 0x4, offset = 0x4, fixed_abs, tag = 'smem constant byte address 0x4 - core index']
  #allocation1 [shape = 'u32[72,128]{1,0:T(1,128)}', space=vmem, size = 0x9000, scoped, tag = 'internal scratch']
  %s0 = inlined_call_operand.vmem [shape: f32[8,64], index: 0, kind: input, shape index: {}]
  %s1 = inlined_call_operand.vmem [shape: f32[1000,32], index: 1, kind: input, shape index: {}]
  %s2 = inlined_call_operand.hbm [shape: f32[8,128], index: 2, kind: output, shape index: {}]
  %s3 = sld [smem:[#allocation0]]
  $region18: #{tpu_custom_call.1} parent=0
    _
  %s5 = ssub.s32 1, %s3
  %s6 = scalar_select 0, %s5, %s3
  $region1: #{tpu_custom_call.1} parent=0
    #allocation2 [shape = 'u8[4096]{0}', space=vmem, size = 0x1000, scoped, tag = 'output window, operand 0, single buffered']
    #allocation3 [shape = 's32[1]{0}', space=sflag, size = 0x4, scoped, tag = 'scoped memory for tpu_custom_call.1']
    %7 = vsyncpa [#allocation3], 0
    // Predicated region
    $region2: #{tpu_custom_call.1} parent=1 // pred_check
      _
    $region3: #{tpu_custom_call.1} parent=1 // pred_check_branch
      %9 = sbr.rel (0) target = $region5
    $region4: #{tpu_custom_call.1} parent=1 // pred_region
      _
    $region5: #{tpu_custom_call.1} parent=1 // pred_fallthru
      _
    // Predicated region
    $region6: #{tpu_custom_call.1} parent=1 // pred_check
      _
    $region7: #{tpu_custom_call.1} parent=1 // pred_check_branch
      %11 = sbr.rel (0) target = $region9
    $region8: #{tpu_custom_call.1} parent=1 // pred_region
      _
    $region9: #{tpu_custom_call.1} parent=1 // pred_fallthru
      _
    %v12 = vld [vmem:[%s1] sm:$0xff]
    %v13 = vld [vmem:[%s0] sm:$0xff]
    %15 = vrot.lane.b32.xlu0 %v12, 32
    %v16 = vpop.permute.xlu0 %15
    %19 = vrot.lane.b32.xlu0 %v13, 32
    %v20 = vpop.permute.xlu0 %19
    %22 = vrot.lane.b32.xlu0 %v12, 96
    %v23 = vpop.permute.xlu0 %22
    %vm25 = vcmask 261120
    %v26 = vsel %vm25, %v13, %v16
    %vm27 = vcmask 523264
    %v28 = vsel %vm27, %v26, %v20
    %vm29 = vcmask 785408
    %v30 = vsel %vm29, %v28, %v23
    %31 = vst [vmem:[#allocation2] sm:$0xff] %v30
    // Predicated region
    $region10: #{tpu_custom_call.1} parent=1 // pred_check
      _
    $region11: #{tpu_custom_call.1} parent=1 // pred_check_branch
      %33 = sbr.rel (0) target = $region13
    $region12: #{tpu_custom_call.1} parent=1 // pred_region
      %35 = vsyncadd [#allocation3], 0
      %s37 = sshll.u32 [#allocation2], 4
      %s38 = int_to_ptr.vmem [resolvable:$true] %s37
      %s39 = sshll.u32 %s2, 4
      %s40 = int_to_ptr.hbm [resolvable:$true] %s39
      %42 = dma.vmem_to_hbm [thread:$0]  %s38, 128, %s40, [#allocation3]
    $region13: #{tpu_custom_call.1} parent=1 // pred_fallthru
      _
    // Predicated region
    $region14: #{tpu_custom_call.1} parent=1 // pred_check
      _
    $region15: #{tpu_custom_call.1} parent=1 // pred_check_branch
      %44 = sbr.rel (0) target = $region17
    $region16: #{tpu_custom_call.1} parent=1 // pred_region
      %46 = dma.done [#allocation3], 128
    $region17: #{tpu_custom_call.1} parent=1 // pred_fallthru
      _
    %47 = vsyncpa [#allocation3], 1

</llo_original>
